<compile_context>
chip_gen: v5e
topology: v5e:2x2
jax: 0.10.0
libtpu: 0.0.40
codegen_flags: <defaults>
</compile_context>

<pallas_src>
import functools

import jax
import jax.numpy as jnp
from jax import lax
from jax.experimental import pallas as pl
from jax.experimental.pallas import tpu as pltpu


def _positive_contrast_kernel(f_ref, c_ref, o_ref, acc_ref, *, n_rows, block_b,
                              mask_tail):
    i = pl.program_id(0)

    @pl.when(i == 0)
    def _init():
        acc_ref[0] = jnp.float32(0.0)

    # Per-row contractions: VPU multiplies + XLU row reduces. No Gram matrix,
    # no transpose, no MXU — everything is O(block_b * D).
    f = f_ref[...].astype(jnp.float32)                    # [block_b, D]
    c = c_ref[...].astype(jnp.float32)                    # [block_b, D]

    dots = jnp.sum(f * c, axis=1, keepdims=True)          # [block_b, 1]
    f_sq = jnp.sum(f * f, axis=1, keepdims=True)          # [block_b, 1]
    c_sq = jnp.sum(c * c, axis=1, keepdims=True)          # [block_b, 1]

    # 1/(||f_i|| * ||c_i||) as a product of two rsqrts (EUP slot); safer than
    # rsqrt(f_sq * c_sq) against overflow/underflow of the product.
    inv_denom = lax.rsqrt(f_sq) * lax.rsqrt(c_sq)         # [block_b, 1]
    cos = dots * inv_denom                                # [block_b, 1]

    if mask_tail:
        # Last block may read unspecified padding rows; zero their contribution.
        row = i * block_b + lax.broadcasted_iota(jnp.int32, cos.shape, 0)
        cos = jnp.where(row < n_rows, cos, jnp.float32(0.0))

    acc_ref[0] = acc_ref[0] + jnp.sum(cos)

    @pl.when(i == pl.num_programs(0) - 1)
    def _finalize():
        o_ref[0, 0] = jnp.float32(1.0) - acc_ref[0] / jnp.float32(n_rows)


def positive_contrast_loss(feature, centroid, *,
                           target_tile_bytes=2 * 1024 * 1024):
    """feature, centroid: [B, D] (f32 or bf16) -> scalar f32 loss."""
    assert feature.ndim == 2 and feature.shape == centroid.shape
    B, D = feature.shape
    assert B >= 1 and D >= 1

    itemsize = max(jnp.dtype(feature.dtype).itemsize,
                   jnp.dtype(centroid.dtype).itemsize)
    # Sublane row packing: 8 rows for 4-byte, 16 for 2-byte, 32 for 1-byte.
    pack = max(8, 32 // itemsize)

    # Biggest row-tile that (a) hits ~target_tile_bytes per input block,
    # (b) is a multiple of the packing, (c) doesn't exceed the padded batch.
    row_bytes = D * itemsize
    block_b = max(pack, (target_tile_bytes // max(row_bytes, 1)) // pack * pack)
    b_ceil = -(-B // pack) * pack
    block_b = min(block_b, b_ceil)

    num_blocks = pl.cdiv(B, block_b)
    mask_tail = (B % block_b) != 0

    # 2 inputs x 2 pipeline buffers x tile, plus headroom; keep well under the
    # v7x 64 MiB physical VMEM (and the 16/32 MiB default scoped limits).
    tile_bytes = block_b * D * itemsize
    vmem_limit = int(min(48 * 1024 * 1024,
                         max(16 * 1024 * 1024, 4 * tile_bytes + (2 << 20))))

    kernel = functools.partial(_positive_contrast_kernel,
                               n_rows=B, block_b=block_b, mask_tail=mask_tail)

    out = pl.pallas_call(
        kernel,
        out_shape=jax.ShapeDtypeStruct((1, 1), jnp.float32),
        grid=(num_blocks,),
        in_specs=[
            pl.BlockSpec((block_b, D), lambda i: (i, 0)),
            pl.BlockSpec((block_b, D), lambda i: (i, 0)),
        ],
        out_specs=pl.BlockSpec(memory_space=pltpu.MemorySpace.SMEM),
        scratch_shapes=[pltpu.SMEM((1,), jnp.float32)],
        compiler_params=pltpu.CompilerParams(
            dimension_semantics=("arbitrary",),
            vmem_limit_bytes=vmem_limit,
        ),
    )(feature, centroid)
    return out[0, 0]


def _reference(feature, centroid):
    # Pure-JAX mirror of the PyTorch forward (manual cosine, no eps).
    f = feature.astype(jnp.float32)
    c = centroid.astype(jnp.float32)
    f_norm = jnp.sqrt(jnp.sum(f * f, axis=1))
    c_norm = jnp.sqrt(jnp.sum(c * c, axis=1))
    dots = jnp.sum(f * c, axis=1)
    cos = dots / (f_norm * c_norm)
    return 1.0 - jnp.mean(cos)


if __name__ == "__main__":
    key = jax.random.PRNGKey(0)

    # Case 1: small shape consistent with the module (batch of class features
    # and matching centroids), lane-aligned feature dim. Single-block path.
    B, D = 8, 128
    kf, kc, key = jax.random.split(key, 3)
    feature = jax.random.normal(kf, (B, D), dtype=jnp.float32)
    centroid = jax.random.normal(kc, (B, D), dtype=jnp.float32)
    out = jax.block_until_ready(positive_contrast_loss(feature, centroid))
    ref = _reference(feature, centroid)
    assert jnp.allclose(out, ref, atol=1e-5, rtol=1e-5), (out, ref)

    # Case 2: exercise the multi-block grid, the SMEM accumulator and the
    # ragged-tail masking by forcing a small tile.
    B2, D2 = 50, 384
    kf2, kc2, key = jax.random.split(key, 3)
    feature2 = jax.random.normal(kf2, (B2, D2), dtype=jnp.float32)
    centroid2 = jax.random.normal(kc2, (B2, D2), dtype=jnp.float32)
    out2 = jax.block_until_ready(
        positive_contrast_loss(feature2, centroid2,
                               target_tile_bytes=16 * D2 * 4))
    ref2 = _reference(feature2, centroid2)
    assert jnp.allclose(out2, ref2, atol=1e-5, rtol=1e-5), (out2, ref2)

    print("KERNEL_OK")
</pallas_src>

<mosaic_0001>
module attributes {stable_mosaic.version = 11 : i64} {
  func.func @_positive_contrast_kernel(%arg0: i32, %arg1: memref<8x128xf32, #tpu.memory_space<vmem>>, %arg2: memref<8x128xf32, #tpu.memory_space<vmem>>, %arg3: memref<1x1xf32, #tpu.memory_space<smem>>, %arg4: memref<1xf32, #tpu.memory_space<smem>>) attributes {dimension_semantics = [#tpu.dimension_semantics<arbitrary>], iteration_bounds = array<i64: 1>, scalar_prefetch = 0 : i64, scratch_operands = 1 : i64, tpu.core_type = #tpu.core_type<tc>, window_params = [{transform_indices = @transform_0, window_bounds = array<i64: 8, 128>}, {transform_indices = @transform_1, window_bounds = array<i64: 8, 128>}, {transform_indices = @transform_2, window_bounds = array<i64: 1, 1>}]} {
    %c0_i32 = arith.constant 0 : i32
    %0 = arith.cmpi eq, %arg0, %c0_i32 : i32
    %1 = arith.extui %0 : i1 to i32
    %c0_i32_0 = arith.constant 0 : i32
    %2 = arith.cmpi ne, %1, %c0_i32_0 : i32
    scf.if %2 {
      %cst_11 = arith.constant 0.000000e+00 : f32
      %c0_12 = arith.constant 0 : index
      %28 = memref.load %arg4[%c0_12] : memref<1xf32, #tpu.memory_space<smem>>
      memref.store %cst_11, %arg4[%c0_12] : memref<1xf32, #tpu.memory_space<smem>>
    } else {
    }
    %c0 = arith.constant 0 : index
    %c0_1 = arith.constant 0 : index
    %3 = vector.load %arg1[%c0, %c0_1] : memref<8x128xf32, #tpu.memory_space<vmem>>, vector<8x128xf32>
    %c0_2 = arith.constant 0 : index
    %c0_3 = arith.constant 0 : index
    %4 = vector.load %arg2[%c0_2, %c0_3] : memref<8x128xf32, #tpu.memory_space<vmem>>, vector<8x128xf32>
    %5 = arith.mulf %3, %4 : vector<8x128xf32>
    %cst = arith.constant dense<0.000000e+00> : vector<8xf32>
    %6 = vector.multi_reduction <add>, %5, %cst [1] : vector<8x128xf32> to vector<8xf32>
    %7 = vector.shape_cast %6 : vector<8xf32> to vector<8x1xf32>
    %8 = arith.mulf %3, %3 : vector<8x128xf32>
    %cst_4 = arith.constant dense<0.000000e+00> : vector<8xf32>
    %9 = vector.multi_reduction <add>, %8, %cst_4 [1] : vector<8x128xf32> to vector<8xf32>
    %10 = vector.shape_cast %9 : vector<8xf32> to vector<8x1xf32>
    %11 = arith.mulf %4, %4 : vector<8x128xf32>
    %cst_5 = arith.constant dense<0.000000e+00> : vector<8xf32>
    %12 = vector.multi_reduction <add>, %11, %cst_5 [1] : vector<8x128xf32> to vector<8xf32>
    %13 = vector.shape_cast %12 : vector<8xf32> to vector<8x1xf32>
    %14 = math.rsqrt %10 : vector<8x1xf32>
    %15 = math.rsqrt %13 : vector<8x1xf32>
    %16 = arith.mulf %14, %15 : vector<8x1xf32>
    %17 = arith.mulf %7, %16 : vector<8x1xf32>
    %c0_6 = arith.constant 0 : index
    %18 = memref.load %arg4[%c0_6] : memref<1xf32, #tpu.memory_space<smem>>
    %19 = vector.shape_cast %17 : vector<8x1xf32> to vector<1x8x1xf32>
    %cst_7 = arith.constant dense<0.000000e+00> : vector<1xf32>
    %20 = vector.multi_reduction <add>, %19, %cst_7 [1, 2] : vector<1x8x1xf32> to vector<1xf32>
    %21 = vector.shape_cast %20 : vector<1xf32> to vector<1x1x1xf32>
    %22 = vector.extract %21[0, 0, 0] : f32 from vector<1x1x1xf32>
    %23 = arith.addf %18, %22 : f32
    %c0_8 = arith.constant 0 : index
    %24 = memref.load %arg4[%c0_8] : memref<1xf32, #tpu.memory_space<smem>>
    memref.store %23, %arg4[%c0_8] : memref<1xf32, #tpu.memory_space<smem>>
    %c0_i32_9 = arith.constant 0 : i32
    %25 = arith.cmpi eq, %arg0, %c0_i32_9 : i32
    %26 = arith.extui %25 : i1 to i32
    %c0_i32_10 = arith.constant 0 : i32
    %27 = arith.cmpi ne, %26, %c0_i32_10 : i32
    scf.if %27 {
      %c0_11 = arith.constant 0 : index
      %28 = memref.load %arg4[%c0_11] : memref<1xf32, #tpu.memory_space<smem>>
      %cst_12 = arith.constant 8.000000e+00 : f32
      %29 = arith.divf %28, %cst_12 : f32
      %cst_13 = arith.constant 1.000000e+00 : f32
      %30 = arith.subf %cst_13, %29 : f32
      %c0_14 = arith.constant 0 : index
      %c0_15 = arith.constant 0 : index
      %31 = memref.load %arg3[%c0_14, %c0_15] : memref<1x1xf32, #tpu.memory_space<smem>>
      memref.store %30, %arg3[%c0_14, %c0_15] : memref<1x1xf32, #tpu.memory_space<smem>>
    } else {
    }
    return
  }
  func.func @transform_0(%arg0: i32) -> (i32, i32) {
    %c0_i32 = arith.constant 0 : i32
    %c0_i32_0 = arith.constant 0 : i32
    return %arg0, %c0_i32 : i32, i32
  }
  func.func @transform_1(%arg0: i32) -> (i32, i32) {
    %c0_i32 = arith.constant 0 : i32
    %c0_i32_0 = arith.constant 0 : i32
    return %arg0, %c0_i32 : i32, i32
  }
  func.func @transform_2(%arg0: i32) -> (i32, i32) {
    %c0_i32 = arith.constant 0 : i32
    %c0_i32_0 = arith.constant 0 : i32
    %c0_i32_1 = arith.constant 0 : i32
    return %c0_i32, %c0_i32_0 : i32, i32
  }
}

</mosaic_0001>

<llo_original>
// kernel: tpu_custom_call.1
$region0: #{tpu_custom_call.1}
  #allocation0 [shape = 'u32[]', space=smem, size = 0x4, offset = 0x4, fixed_abs, tag = 'smem constant byte address 0x4 - core index']
  #allocation1 [shape = 'u32[72,128]{1,0:T(1,128)}', space=vmem, size = 0x9000, scoped, tag = 'internal scratch']
  #allocation2 [shape = 'f32[1]{0:T(128)}', space=smem, size = 0x200, scoped, tag = 'scratch operand']
  %s0 = inlined_call_operand.hbm [shape: f32[8,128], index: 0, kind: input, shape index: {}]
  %s1 = inlined_call_operand.hbm [shape: f32[8,128], index: 1, kind: input, shape index: {}]
  %s2 = inlined_call_operand.hbm [shape: f32[1,1], index: 2, kind: output, shape index: {}]
  %s3 = sld [smem:[#allocation0]]
  $region34: #{tpu_custom_call.1} parent=0
    _
  %s5 = ssub.s32 1, %s3
  %s6 = scalar_select 0, %s5, %s3
  $region1: #{tpu_custom_call.1} parent=0
    #allocation3 [shape = 'u8[4096]{0}', space=vmem, size = 0x1000, scoped, tag = 'input window, operand 0, single buffered']
    #allocation4 [shape = 's32[1]{0}', space=sflag, size = 0x4, scoped, tag = 'scoped memory for tpu_custom_call.1']
    #allocation5 [shape = 's32[1]{0}', space=sflag, size = 0x4, scoped, tag = 'scoped memory for tpu_custom_call.1']
    #allocation6 [shape = 'u8[4096]{0}', space=vmem, size = 0x1000, scoped, tag = 'input window, operand 1, single buffered']
    #allocation7 [shape = 's32[1]{0}', space=sflag, size = 0x4, scoped, tag = 'scoped memory for tpu_custom_call.1']
    #allocation8 [shape = 'u8[512]{0}', space=smem, size = 0x200, scoped, tag = 'output window, operand 0, single buffered']
    %7 = vsyncpa [#allocation4], 0
    %8 = vsyncpa [#allocation7], 0
    %9 = vsyncpa [#allocation5], 0
    // Predicated region
    $region2: #{tpu_custom_call.1} parent=1 // pred_check
      _
    $region3: #{tpu_custom_call.1} parent=1 // pred_check_branch
      %11 = sbr.rel (0) target = $region5
    $region4: #{tpu_custom_call.1} parent=1 // pred_region
      %13 = vsyncadd [#allocation4], 0
      %s15 = sshll.u32 %s0, 4
      %s16 = int_to_ptr.hbm [resolvable:$true] %s15
      %s17 = sshll.u32 [#allocation3], 4
      %s18 = int_to_ptr.vmem [resolvable:$true] %s17
      %20 = dma.hbm_to_vmem [thread:$0]  %s16, 128, %s18, [#allocation4]
    $region5: #{tpu_custom_call.1} parent=1 // pred_fallthru
      _
    // Predicated region
    $region6: #{tpu_custom_call.1} parent=1 // pred_check
      _
    $region7: #{tpu_custom_call.1} parent=1 // pred_check_branch
      %22 = sbr.rel (0) target = $region9
    $region8: #{tpu_custom_call.1} parent=1 // pred_region
      %24 = vsyncadd [#allocation7], 0
      %s26 = sshll.u32 %s1, 4
      %s27 = int_to_ptr.hbm [resolvable:$true] %s26
      %s28 = sshll.u32 [#allocation6], 4
      %s29 = int_to_ptr.vmem [resolvable:$true] %s28
      %31 = dma.hbm_to_vmem [thread:$0]  %s27, 128, %s29, [#allocation7]
    $region9: #{tpu_custom_call.1} parent=1 // pred_fallthru
      _
    // Predicated region
    $region10: #{tpu_custom_call.1} parent=1 // pred_check
      _
    $region11: #{tpu_custom_call.1} parent=1 // pred_check_branch
      %33 = sbr.rel (0) target = $region13
    $region12: #{tpu_custom_call.1} parent=1 // pred_region
      %35 = dma.done [#allocation4], 128
    $region13: #{tpu_custom_call.1} parent=1 // pred_fallthru
      _
    // Predicated region
    $region14: #{tpu_custom_call.1} parent=1 // pred_check
      _
    $region15: #{tpu_custom_call.1} parent=1 // pred_check_branch
      %37 = sbr.rel (0) target = $region17
    $region16: #{tpu_custom_call.1} parent=1 // pred_region
      %39 = dma.done [#allocation7], 128
    $region17: #{tpu_custom_call.1} parent=1 // pred_fallthru
      _
    %p40 = scmp.eq.s32.totalorder 0, 0
    // Predicated region
    $region18: #{tpu_custom_call.1} parent=1 // pred_check
      %p41 = pneg %p40
    $region19: #{tpu_custom_call.1} parent=1 // pred_check_branch
      %43 = sbr.rel (%p41) target = $region21
    $region20: #{tpu_custom_call.1} parent=1 // pred_region
      %s44 = scalar_lea.smem [#allocation2], 0
      %45 = sst [smem:[%s44]] 0.0
    $region21: #{tpu_custom_call.1} parent=1 // pred_fallthru
      _
    %v46 = vld [vmem:[#allocation3] sm:$0xff]
    %v47 = vld [vmem:[#allocation6] sm:$0xff]
    %v48 = vmul.f32 %v46, %v47
    %49 = vadd.xlane.f32.xlu0 %v48
    %v50 = vpop.xlane.xlu0 %49
    %v51 = vmul.f32 %v46, %v46
    %52 = vadd.xlane.f32.xlu0 %v51
    %v53 = vpop.xlane.xlu0 %52
    %v54 = vmul.f32 %v47, %v47
    %55 = vadd.xlane.f32.xlu0 %v54
    %v56 = vpop.xlane.xlu0 %55
    %v57 = vrsqrt.pop %v53
    %v58 = vmul.f32 %v57, %v53
    %v59 = vmul.f32 %v58, %v57
    %v60 = vmul.f32 0.5, %v59
    %v61 = vsub.f32 1.5, %v60
    %v62 = vmul.f32 %v57, %v61
    %vm63 = vweird.f32 %v53
    %vm64 = vweird.f32 %v57
    %vm65 = vmor %vm63, %vm64
    %v66 = vsel %vm65, %v57, %v62
    %v67 = vrsqrt.pop %v56
    %v68 = vmul.f32 %v67, %v56
    %v69 = vmul.f32 %v68, %v67
    %v70 = vmul.f32 0.5, %v69
    %v71 = vsub.f32 1.5, %v70
    %v72 = vmul.f32 %v67, %v71
    %vm73 = vweird.f32 %v56
    %vm74 = vweird.f32 %v67
    %vm75 = vmor %vm73, %vm74
    %v76 = vsel %vm75, %v67, %v72
    %v77 = vmul.f32 %v66, %v76
    %v78 = vmul.f32 %v50, %v77
    %s79 = sld [smem:[#allocation2]]
    %vm80 = vcmask 7168
    %v81 = vsel %vm80, %v78, 0.0
    %82 = vadd.xlane.f32.xlu0 %v81
    %v83 = vpop.xlane.xlu0 %82
    %v84 = vrot.slane %v83, 4
    %v85 = vadd.f32 %v83, %v84
    %v86 = vrot.slane %v85, 2
    %v87 = vadd.f32 %v85, %v86
    %v88 = vrot.slane %v87, 1
    %v89 = vadd.f32 %v87, %v88
    %s90 = vtos %v89
    %s91 = sadd.f32 %s79, %s90
    %s92 = scalar_lea.smem [#allocation2], 0
    %93 = sst [smem:[%s92]] %s91
    // Predicated region
    $region22: #{tpu_custom_call.1} parent=1 // pred_check
      %p94 = pneg %p40
    $region23: #{tpu_custom_call.1} parent=1 // pred_check_branch
      %96 = sbr.rel (%p94) target = $region25
    $region24: #{tpu_custom_call.1} parent=1 // pred_region
      %s97 = sld [smem:[#allocation2]]
      %v98 = vrcp.pop 8.0
      %v99 = vmul.f32 8.0, %v98
      %v100 = vsub.f32 1.0, %v99
      %v101 = vmul.f32 %v98, %v100
      %v102 = vadd.f32 %v98, %v101
      %vm103 = vweird.f32 %v98
      %v104 = vsel %vm103, %v98, %v102
      %s105 = vtos %v104
      %s106 = smul.f32 %s97, %s105
      %s107 = ssub.f32 1.0, %s106
      %s108 = scalar_lea.smem [#allocation8], 0
      %109 = sst [smem:[%s108]] %s107
    $region25: #{tpu_custom_call.1} parent=1 // pred_fallthru
      _
    // Predicated region
    $region26: #{tpu_custom_call.1} parent=1 // pred_check
      _
    $region27: #{tpu_custom_call.1} parent=1 // pred_check_branch
      %111 = sbr.rel (0) target = $region29
    $region28: #{tpu_custom_call.1} parent=1 // pred_region
      %113 = vsyncadd [#allocation5], 0
      %s115 = sshll.u32 %s2, 4
      %s116 = int_to_ptr.hbm [resolvable:$true] %s115
      %118 = dma.smem_to_hbm [#allocation8], 16, %s116, [#allocation5]
    $region29: #{tpu_custom_call.1} parent=1 // pred_fallthru
      _
    // Predicated region
    $region30: #{tpu_custom_call.1} parent=1 // pred_check
      _
    $region31: #{tpu_custom_call.1} parent=1 // pred_check_branch
      %120 = sbr.rel (0) target = $region33
    $region32: #{tpu_custom_call.1} parent=1 // pred_region
      %122 = dma.done [#allocation5], 16
    $region33: #{tpu_custom_call.1} parent=1 // pred_fallthru
      _
    %123 = sfence
    %124 = vsyncpa [#allocation4], 1
    %125 = vsyncpa [#allocation7], 1
    %126 = vsyncpa [#allocation5], 1

</llo_original>
